<compile_context>
chip_gen: v7x
topology: tpu7x:2x2x1
jax: 0.10.0
libtpu: 0.0.40
codegen_flags: <defaults>
</compile_context>

<pallas_src>
import math

import jax
import jax.numpy as jnp
from jax.experimental import pallas as pl
from jax.experimental.pallas import tpu as pltpu

_PACK = 8                # x rows packed per kernel row -> output last dim = 8*N (128 for N=16)
_MIN_GRID_STEPS = 4      # aim for >=4 row tiles so both v7x TensorCores get work
_VMEM_BUDGET = 24 << 20  # double-buffered (x-tile + out-tile) budget; fits v5e/v6e/v7x
_VMEM_LIMIT = 28 << 20   # scoped-VMEM limit for Mosaic (<= v7x's 64 MiB physical VMEM)


def _round_up(a, b):
    return -(-a // b) * b


def _dimselect_kernel(x_ref, w_ref, o_ref):
    # (TM, 8*K) @ (8*K, 8*N) on the MXU with f32 accumulation.
    o_ref[...] = jnp.dot(
        x_ref[...], w_ref[...], preferred_element_type=jnp.float32
    ).astype(o_ref.dtype)


def _dim_select_packed(x2d, W, out_dtype):
    """x2d: (M, K) with M % 8 == 0.  Returns (M, N) = x2d @ W via the packed kernel."""
    M, K = x2d.shape
    N = W.shape[1]
    Mp = M // _PACK

    x_packed = x2d.reshape(Mp, _PACK * K)                    # contiguous -> free reshape
    # Block-diagonal weight (8*K, 8*N): tiny (128 KiB for K=32, N=16), VMEM-resident.
    w_packed = jnp.kron(jnp.eye(_PACK, dtype=W.dtype), W)

    # Row-tile size from a VMEM budget (double-buffered x-tile + out-tile), while
    # keeping >= _MIN_GRID_STEPS grid steps for moderate M (v7x dual-TC sharding).
    # Tiny inputs fall back to a single full-extent block (always legal).
    bytes_per_row = _PACK * (
        K * x_packed.dtype.itemsize + N * jnp.dtype(out_dtype).itemsize
    )
    tm_cap = max(_PACK, (_VMEM_BUDGET // (2 * bytes_per_row)) // _PACK * _PACK)
    if Mp <= _PACK:
        TM = Mp
    else:
        TM = min(tm_cap, max(_PACK, _round_up(pl.cdiv(Mp, _MIN_GRID_STEPS), _PACK)))
    grid = (pl.cdiv(Mp, TM),)

    out_packed = pl.pallas_call(
        _dimselect_kernel,
        out_shape=jax.ShapeDtypeStruct((Mp, _PACK * N), out_dtype),
        grid_spec=pltpu.PrefetchScalarGridSpec(
            num_scalar_prefetch=0,
            grid=grid,
            in_specs=[
                pl.BlockSpec((TM, _PACK * K), lambda i: (i, 0)),
                pl.BlockSpec((_PACK * K, _PACK * N), lambda i: (0, 0)),  # resident W
            ],
            out_specs=pl.BlockSpec((TM, _PACK * N), lambda i: (i, 0)),
        ),
        compiler_params=pltpu.CompilerParams(
            dimension_semantics=("parallel",),   # shard row tiles across TCs on v7x
            vmem_limit_bytes=_VMEM_LIMIT,
        ),
    )(x_packed, w_packed)

    # Unpack: (Mp, 8*N) -> (M, N) is a row-major contiguous (free) reshape.
    return out_packed.reshape(M, N)


def dim_select(x, W):
    """DimSelect forward: x @ W.  x: (..., K), W: (K, N) -> (..., N)."""
    *lead, K = x.shape
    Kw, N = W.shape
    assert K == Kw, "last dim of x must equal in_channels of W"

    out_dtype = jnp.result_type(x.dtype, W.dtype)
    x = x.astype(out_dtype)
    W = W.astype(out_dtype)

    M = math.prod(lead)
    x2d = x.reshape(M, K)

    # Bulk (multiple-of-8 rows) goes through the packed kernel copy-free; any
    # <8-row tail is a tiny plain matmul (avoids jnp.pad + output slice, which
    # would re-materialize the whole tensor in HBM).
    M_bulk = (M // _PACK) * _PACK
    parts = []
    if M_bulk > 0:
        parts.append(_dim_select_packed(x2d[:M_bulk], W, out_dtype))
    if M_bulk < M:
        parts.append((x2d[M_bulk:] @ W).astype(out_dtype))
    out2d = parts[0] if len(parts) == 1 else jnp.concatenate(parts, axis=0)
    return out2d.reshape(*lead, N)


if __name__ == "__main__":
    # Small shapes consistent with the module: in_channels=32, out_channels=16.
    batch, seq, in_channels, out_channels = 2, 8, 32, 16

    # Deterministic parameter init, exactly as the PyTorch __init__ does.
    W = jnp.ones((in_channels, out_channels), dtype=jnp.float32) / in_channels

    key = jax.random.PRNGKey(0)
    k1, k2, k3, k4 = jax.random.split(key, 4)
    x = jax.random.normal(k1, (batch, seq, in_channels), dtype=jnp.float32)

    f = jax.jit(dim_select)

    # Primary check (M = 16, divisible by 8; single-block grid).
    out = jax.block_until_ready(f(x, W))
    ref = jnp.matmul(x, W, precision=jax.lax.Precision.HIGHEST)
    assert out.shape == (batch, seq, out_channels)
    assert jnp.allclose(out, ref, atol=1e-5, rtol=1e-5)

    # Tail path: M = 3*7 = 21 rows (not a multiple of 8) -> bulk kernel + tiny tail matmul.
    W2 = jax.random.normal(k2, (in_channels, out_channels), dtype=jnp.float32)
    x2 = jax.random.normal(k3, (3, 7, in_channels), dtype=jnp.float32)
    out2 = jax.block_until_ready(f(x2, W2))
    ref2 = jnp.matmul(x2, W2, precision=jax.lax.Precision.HIGHEST)
    assert jnp.allclose(out2, ref2, atol=1e-4, rtol=1e-5)

    # Multi-step grid with a partial last output block: M = 160 -> Mp = 20, TM = 8, grid = 3.
    x3 = jax.random.normal(k4, (4, 40, in_channels), dtype=jnp.float32)
    out3 = jax.block_until_ready(f(x3, W2))
    ref3 = jnp.matmul(x3, W2, precision=jax.lax.Precision.HIGHEST)
    assert jnp.allclose(out3, ref3, atol=1e-4, rtol=1e-5)

    print("KERNEL_OK")
</pallas_src>

<mosaic_0001>
module attributes {stable_mosaic.version = 11 : i64} {
  func.func @_dimselect_kernel(%arg0: i32, %arg1: memref<2x256xf32, #tpu.memory_space<vmem>>, %arg2: memref<256x128xf32, #tpu.memory_space<vmem>>, %arg3: memref<2x128xf32, #tpu.memory_space<vmem>>) attributes {dimension_semantics = [#tpu.dimension_semantics<parallel>], iteration_bounds = array<i64: 1>, scalar_prefetch = 0 : i64, scratch_operands = 0 : i64, tpu.core_type = #tpu.core_type<tc>, window_params = [{transform_indices = @transform_0, window_bounds = array<i64: 2, 256>}, {pipeline_mode = #tpu.pipeline_mode<synchronous>, transform_indices = @transform_1, window_bounds = array<i64: 256, 128>}, {transform_indices = @transform_2, window_bounds = array<i64: 2, 128>}]} {
    %c0 = arith.constant 0 : index
    %c0_0 = arith.constant 0 : index
    %0 = vector.load %arg1[%c0, %c0_0] : memref<2x256xf32, #tpu.memory_space<vmem>>, vector<2x256xf32>
    %c0_1 = arith.constant 0 : index
    %c0_2 = arith.constant 0 : index
    %1 = vector.load %arg2[%c0_1, %c0_2] : memref<256x128xf32, #tpu.memory_space<vmem>>, vector<256x128xf32>
    %cst = arith.constant dense<0.000000e+00> : vector<2x128xf32>
    %2 = tpu.matmul %0, %1, %cst {dimension_numbers = #tpu.dot_dimension_numbers<[1], [0], [0], [1], [0, 0, 1, 1], [], []>} : vector<2x256xf32>, vector<256x128xf32>, vector<2x128xf32> -> vector<2x128xf32>
    %c0_3 = arith.constant 0 : index
    %c0_4 = arith.constant 0 : index
    %3 = vector.load %arg3[%c0_3, %c0_4] : memref<2x128xf32, #tpu.memory_space<vmem>>, vector<2x128xf32>
    tpu.vector_store %arg3[%c0_3, %c0_4], %2 {strides = array<i32>} : memref<2x128xf32, #tpu.memory_space<vmem>>, vector<2x128xf32>,
    return
  }
  func.func @transform_0(%arg0: i32) -> (i32, i32) {
    %c0_i32 = arith.constant 0 : i32
    %c0_i32_0 = arith.constant 0 : i32
    return %arg0, %c0_i32 : i32, i32
  }
  func.func @transform_1(%arg0: i32) -> (i32, i32) {
    %c0_i32 = arith.constant 0 : i32
    %c0_i32_0 = arith.constant 0 : i32
    %c0_i32_1 = arith.constant 0 : i32
    return %c0_i32, %c0_i32_0 : i32, i32
  }
  func.func @transform_2(%arg0: i32) -> (i32, i32) {
    %c0_i32 = arith.constant 0 : i32
    %c0_i32_0 = arith.constant 0 : i32
    return %arg0, %c0_i32 : i32, i32
  }
}

</mosaic_0001>

<llo_original>
// kernel: dim_select.1
$region0: #{dim_select.1}
  #allocation0 [shape = 'u32[]', space=smem, size = 0x4, offset = 0x4, fixed_abs, tag = 'smem constant byte address 0x4 - core index']
  #allocation1 [shape = 'u32[144,128]{1,0:T(1,128)}', space=vmem, size = 0x12000, scoped, tag = 'internal scratch']
  %s0 = inlined_call_operand.vmem [shape: f32[2,256], index: 0, kind: input, shape index: {}]
  %s1 = inlined_call_operand.vmem [shape: f32[256,128], index: 1, kind: input, shape index: {}]
  %s2 = inlined_call_operand.vmem [shape: f32[2,128], index: 2, kind: output, shape index: {}]
  %s3 = sld [smem:[#allocation0]]
  $region18: #{dim_select.1} parent=0
    _
  %s5 = ssub.s32 1, %s3
  %s6 = scalar_select 0, %s5, %s3
  // Predicated region
  $region2: #{dim_select.1} parent=0 // pred_check
    _
  $region3: #{dim_select.1} parent=0 // pred_check_branch
    %8 = sbr.rel (0) target = $region5
  $region4: #{dim_select.1} parent=0 // pred_region
    _
  $region5: #{dim_select.1} parent=0 // pred_fallthru
    _
  // Predicated region
  $region6: #{dim_select.1} parent=0 // pred_check
    _
  $region7: #{dim_select.1} parent=0 // pred_check_branch
    %10 = sbr.rel (0) target = $region9
  $region8: #{dim_select.1} parent=0 // pred_region
    _
  $region9: #{dim_select.1} parent=0 // pred_fallthru
    _
  %v11 = vld [vmem:[%s0] sm:$0xf]
  %v12 = vld [vmem:[%s1] sm:$0xff]
  %v13 = vld [vmem:[%s1 + $0x8] sm:$0xff]
  %v14 = vld [vmem:[%s1 + $0x10] sm:$0xff]
  %v15 = vld [vmem:[%s1 + $0x18] sm:$0xff]
  %v16 = vld [vmem:[%s1 + $0x20] sm:$0xff]
  %v17 = vld [vmem:[%s1 + $0x28] sm:$0xff]
  %v18 = vld [vmem:[%s1 + $0x30] sm:$0xff]
  %v19 = vld [vmem:[%s1 + $0x38] sm:$0xff]
  %v20 = vld [vmem:[%s1 + $0x40] sm:$0xff]
  %v21 = vld [vmem:[%s1 + $0x48] sm:$0xff]
  %v22 = vld [vmem:[%s1 + $0x50] sm:$0xff]
  %v23 = vld [vmem:[%s1 + $0x58] sm:$0xff]
  %v24 = vld [vmem:[%s1 + $0x60] sm:$0xff]
  %v25 = vld [vmem:[%s1 + $0x68] sm:$0xff]
  %v26 = vld [vmem:[%s1 + $0x70] sm:$0xff]
  %v27 = vld [vmem:[%s1 + $0x78] sm:$0xff]
  %v28 = vld [vmem:[%s1 + $0x80] sm:$0xff]
  %v29 = vld [vmem:[%s1 + $0x88] sm:$0xff]
  %v30 = vld [vmem:[%s1 + $0x90] sm:$0xff]
  %v31 = vld [vmem:[%s1 + $0x98] sm:$0xff]
  %v32 = vld [vmem:[%s1 + $0xa0] sm:$0xff]
  %v33 = vld [vmem:[%s1 + $0xa8] sm:$0xff]
  %v34 = vld [vmem:[%s1 + $0xb0] sm:$0xff]
  %v35 = vld [vmem:[%s1 + $0xb8] sm:$0xff]
  %v36 = vld [vmem:[%s1 + $0xc0] sm:$0xff]
  %v37 = vld [vmem:[%s1 + $0xc8] sm:$0xff]
  %v38 = vld [vmem:[%s1 + $0xd0] sm:$0xff]
  %v39 = vld [vmem:[%s1 + $0xd8] sm:$0xff]
  %v40 = vld [vmem:[%s1 + $0xe0] sm:$0xff]
  %v41 = vld [vmem:[%s1 + $0xe8] sm:$0xff]
  %v42 = vld [vmem:[%s1 + $0xf0] sm:$0xff]
  %v43 = vld [vmem:[%s1 + $0xf8] sm:$0xff]
  %v46 = vunpack.c.l.s4 1983009808
  %v47 = vunpack.c.0.s8 %v46
  %v48 = vlaneseq
  %v49 = vshrl.u32 %v48, 7
  %v50 = vsub.s32 %v47, %v49
  %v51 = vrot.slane %v11, %v50
  %v52 = vcombine.high %v51, %v51
  %55 = vmatprep.subr.mxu0 0.0
  %56 = vmatpush1.msra.mxu0 %v12
  %57 = vmatprep.subr.mxu0 0.0
  %58 = vmatpush1.msra.mxu0 %v13
  %59 = vmatprep.subr.mxu0 0.0
  %60 = vmatpush1.msra.mxu0 %v14
  %61 = vmatprep.subr.mxu0 0.0
  %62 = vmatpush1.msra.mxu0 %v15
  %63 = vmatprep.subr.mxu0 0.0
  %64 = vmatpush1.msra.mxu0 %v16
  %65 = vmatprep.subr.mxu0 0.0
  %66 = vmatpush1.msra.mxu0 %v17
  %67 = vmatprep.subr.mxu0 0.0
  %68 = vmatpush1.msra.mxu0 %v18
  %69 = vmatprep.subr.mxu0 0.0
  %70 = vmatpush1.msra.mxu0 %v19
  %71 = vmatprep.subr.mxu0 0.0
  %72 = vmatpush1.msra.mxu0 %v20
  %73 = vmatprep.subr.mxu0 0.0
  %74 = vmatpush1.msra.mxu0 %v21
  %75 = vmatprep.subr.mxu0 0.0
  %76 = vmatpush1.msra.mxu0 %v22
  %77 = vmatprep.subr.mxu0 0.0
  %78 = vmatpush1.msra.mxu0 %v23
  %79 = vmatprep.subr.mxu0 0.0
  %80 = vmatpush1.msra.mxu0 %v24
  %81 = vmatprep.subr.mxu0 0.0
  %82 = vmatpush1.msra.mxu0 %v25
  %83 = vmatprep.subr.mxu0 0.0
  %84 = vmatpush1.msra.mxu0 %v26
  %85 = vmatprep.subr.mxu0 0.0
  %86 = vmatpush1.msra.mxu0 %v27
  %87 = vmatprep.subr.mxu0 0.0
  %88 = vmatpush1.msra.mxu0 %v28
  %89 = vmatprep.subr.mxu0 0.0
  %90 = vmatpush1.msra.mxu0 %v29
  %91 = vmatprep.subr.mxu0 0.0
  %92 = vmatpush1.msra.mxu0 %v30
  %93 = vmatprep.subr.mxu0 0.0
  %94 = vmatpush1.msra.mxu0 %v31
  %95 = vmatprep.subr.mxu0 0.0
  %96 = vmatpush1.msra.mxu0 %v32
  %97 = vmatprep.subr.mxu0 0.0
  %98 = vmatpush1.msra.mxu0 %v33
  %99 = vmatprep.subr.mxu0 0.0
  %100 = vmatpush1.msra.mxu0 %v34
  %101 = vmatprep.subr.mxu0 0.0
  %102 = vmatpush1.msra.mxu0 %v35
  %103 = vmatprep.subr.mxu0 0.0
  %104 = vmatpush1.msra.mxu0 %v36
  %105 = vmatprep.subr.mxu0 0.0
  %106 = vmatpush1.msra.mxu0 %v37
  %107 = vmatprep.subr.mxu0 0.0
  %108 = vmatpush1.msra.mxu0 %v38
  %109 = vmatprep.subr.mxu0 0.0
  %110 = vmatpush1.msra.mxu0 %v39
  %111 = vmatprep.subr.mxu0 0.0
  %112 = vmatpush1.msra.mxu0 %v40
  %113 = vmatprep.subr.mxu0 0.0
  %114 = vmatpush1.msra.mxu0 %v41
  %115 = vmatprep.subr.mxu0 0.0
  %116 = vmatpush1.msra.mxu0 %v42
  %117 = vmatprep.subr.mxu0 0.0
  %118 = vmatpush1.msra.mxu0 %v43
  %119 = vmatprep.mubr.f32.mxu0 %v52
  %120 = vmatmul.mubr.f32.gmra.mrb[0].mxu0 %v51
  %v121 = vpop.f32.mrb[0].mxu0
  %v122 = vadd.f32 0.0, %v121
  %v123 = vpop.f32.mrb[0].mxu0
  %124 = vdwg.mxu0
  %125 = vst [vmem:[%s2] sm:$0x3] %v122
  // Predicated region
  $region10: #{dim_select.1} parent=0 // pred_check
    _
  $region11: #{dim_select.1} parent=0 // pred_check_branch
    %127 = sbr.rel (0) target = $region13
  $region12: #{dim_select.1} parent=0 // pred_region
    _
  $region13: #{dim_select.1} parent=0 // pred_fallthru
    _
  // Predicated region
  $region14: #{dim_select.1} parent=0 // pred_check
    _
  $region15: #{dim_select.1} parent=0 // pred_check_branch
    %129 = sbr.rel (0) target = $region17
  $region16: #{dim_select.1} parent=0 // pred_region
    _
  $region17: #{dim_select.1} parent=0 // pred_fallthru
    _

</llo_original>
